<compile_context>
chip_gen: v5e
topology: v5e:2x2
jax: 0.10.0
libtpu: 0.0.40
codegen_flags: <defaults>
</compile_context>

<pallas_src>
import math

import jax
import jax.numpy as jnp
from jax.experimental import pallas as pl
from jax.experimental.pallas import tpu as pltpu


# ---------------------------------------------------------------------------
# Kernel: one grid step processes one row tile (tm, D) end-to-end.
# ---------------------------------------------------------------------------
def feedforward_kernel(x_ref, w1_ref, b1_ref, w2_ref, b2_ref, o_ref):
    x = x_ref[...]                                      # (tm, D) f32

    # fc1: bf16 MXU inputs, f32 accumulation.
    h = jnp.dot(x.astype(jnp.bfloat16), w1_ref[...],
                preferred_element_type=jnp.float32)
    h = h + b1_ref[...]                                 # (tm, Hid) f32

    # Exact (erf) GELU in f32 — matches torch.nn.GELU default.
    h = 0.5 * h * (1.0 + jax.lax.erf(h * (1.0 / math.sqrt(2.0))))

    # dropout(p=0.0) is the identity (inference semantics).

    # fc2: bf16 MXU inputs, f32 accumulation.
    y = jnp.dot(h.astype(jnp.bfloat16), w2_ref[...],
                preferred_element_type=jnp.float32)
    y = y + b2_ref[...]                                 # (tm, Dout) f32

    o_ref[...] = y.astype(o_ref.dtype)


# ---------------------------------------------------------------------------
# Wrapper
# ---------------------------------------------------------------------------
def _pick_block_m(m):
    # Largest row tile (multiple of 8) dividing m, preferring >= 2 grid steps
    # so the pipeline / megacore sharding has something to work with.
    for tm in (512, 256, 128, 64, 32, 16, 8):
        if m % tm == 0 and m // tm >= 2:
            return tm
    for tm in (512, 256, 128, 64, 32, 16, 8):
        if m % tm == 0:
            return tm
    return m  # irregular m: single full-size block (allowed by Pallas)


def feedforward_pallas(x, params, *, block_m=None):
    B, S, D = x.shape
    w1, b1, w2, b2 = params["w1"], params["b1"], params["w2"], params["b2"]
    Hid = w1.shape[1]
    Dout = w2.shape[1]

    M = B * S
    x2d = x.reshape(M, D)                       # lane-dense 2-D activation slab

    tm = block_m if block_m is not None else _pick_block_m(M)
    if M % tm != 0:
        tm = M
    grid = (M // tm,)

    # Weights to bf16 (half the DMA + VMEM footprint); biases stay f32.
    w1b = w1.astype(jnp.bfloat16)
    w2b = w2.astype(jnp.bfloat16)
    b1f = b1.reshape(1, Hid).astype(jnp.float32)
    b2f = b2.reshape(1, Dout).astype(jnp.float32)

    def run(single_buffer_weights: bool):
        if single_buffer_weights:
            # Constant-index blocks: no need to double-buffer them.
            kw = dict(pipeline_mode=pl.Buffered(1))
        else:
            kw = {}

        def w_spec(shape):
            return pl.BlockSpec(shape, lambda i: (0, 0), **kw)

        in_specs = [
            pl.BlockSpec((tm, D), lambda i: (i, 0)),    # x row tile
            w_spec((D, Hid)),                           # W1
            w_spec((1, Hid)),                           # b1
            w_spec((Hid, Dout)),                        # W2
            w_spec((1, Dout)),                          # b2
        ]
        out_spec = pl.BlockSpec((tm, Dout), lambda i: (i, 0))

        return pl.pallas_call(
            feedforward_kernel,
            out_shape=jax.ShapeDtypeStruct((M, Dout), x.dtype),
            grid=grid,
            in_specs=in_specs,
            out_specs=out_spec,
            compiler_params=pltpu.CompilerParams(
                dimension_semantics=("parallel",),
                vmem_limit_bytes=32 * 1024 * 1024,
            ),
        )(x2d, w1b, b1f, w2b, b2f)

    try:
        out2d = run(single_buffer_weights=True)
    except Exception:
        # Fallback if pl.Buffered(1) single-buffering is rejected by this
        # Pallas build; functionally identical (just uses more VMEM).
        out2d = run(single_buffer_weights=False)

    return out2d.reshape(B, S, Dout)


# ---------------------------------------------------------------------------
# Pure-JAX f32 reference (mirrors the PyTorch forward) for correctness check.
# ---------------------------------------------------------------------------
def feedforward_ref(x, params):
    h = x @ params["w1"] + params["b1"]
    h = 0.5 * h * (1.0 + jax.lax.erf(h / jnp.sqrt(2.0)))
    return h @ params["w2"] + params["b2"]


def init_params(key, dim, hidden_dim, dim_out):
    k1, k2, k3, k4 = jax.random.split(key, 4)
    s = 0.02
    return {
        # (in, out) orientation == transpose of torch.nn.Linear.weight.
        "w1": s * jax.random.normal(k1, (dim, hidden_dim), jnp.float32),
        "b1": s * jax.random.normal(k2, (hidden_dim,), jnp.float32),
        "w2": s * jax.random.normal(k3, (hidden_dim, dim_out), jnp.float32),
        "b2": s * jax.random.normal(k4, (dim_out,), jnp.float32),
    }


if __name__ == "__main__":
    # Small but TPU-friendly shapes: [bs, sl, dim] with lane-dense dim.
    B, S = 2, 8
    DIM, HIDDEN = 128, 256
    DIM_OUT = DIM           # dim_out=None in the module -> out_dim = dim

    key = jax.random.PRNGKey(0)
    kx, kp = jax.random.split(key)
    x = jax.random.normal(kx, (B, S, DIM), jnp.float32)
    params = init_params(kp, DIM, HIDDEN, DIM_OUT)

    out = feedforward_pallas(x, params)
    out = jax.block_until_ready(out)

    ref = feedforward_ref(x, params)
    assert out.shape == (B, S, DIM_OUT)
    max_err = float(jnp.max(jnp.abs(out - ref)))
    assert jnp.allclose(out, ref, atol=5e-3, rtol=5e-3), max_err

    print("KERNEL_OK")
</pallas_src>

<mosaic_0001>
module attributes {stable_mosaic.version = 11 : i64} {
  func.func @feedforward_kernel(%arg0: i32, %arg1: memref<8x128xf32, #tpu.memory_space<vmem>>, %arg2: memref<128x256xbf16, #tpu.memory_space<vmem>>, %arg3: memref<1x256xf32, #tpu.memory_space<vmem>>, %arg4: memref<256x128xbf16, #tpu.memory_space<vmem>>, %arg5: memref<1x128xf32, #tpu.memory_space<vmem>>, %arg6: memref<8x128xf32, #tpu.memory_space<vmem>>) attributes {dimension_semantics = [#tpu.dimension_semantics<parallel>], iteration_bounds = array<i64: 2>, scalar_prefetch = 0 : i64, scratch_operands = 0 : i64, tpu.core_type = #tpu.core_type<tc>, window_params = [{transform_indices = @transform_0, window_bounds = array<i64: 8, 128>}, {pipeline_mode = #tpu.pipeline_mode<synchronous>, transform_indices = @transform_1, window_bounds = array<i64: 128, 256>}, {pipeline_mode = #tpu.pipeline_mode<synchronous>, transform_indices = @transform_2, window_bounds = array<i64: 1, 256>}, {pipeline_mode = #tpu.pipeline_mode<synchronous>, transform_indices = @transform_3, window_bounds = array<i64: 256, 128>}, {pipeline_mode = #tpu.pipeline_mode<synchronous>, transform_indices = @transform_4, window_bounds = array<i64: 1, 128>}, {transform_indices = @transform_5, window_bounds = array<i64: 8, 128>}]} {
    %c0 = arith.constant 0 : index
    %c0_0 = arith.constant 0 : index
    %0 = vector.load %arg1[%c0, %c0_0] : memref<8x128xf32, #tpu.memory_space<vmem>>, vector<8x128xf32>
    %1 = arith.truncf %0 : vector<8x128xf32> to vector<8x128xbf16>
    %c0_1 = arith.constant 0 : index
    %c0_2 = arith.constant 0 : index
    %2 = vector.load %arg2[%c0_1, %c0_2] : memref<128x256xbf16, #tpu.memory_space<vmem>>, vector<128x256xbf16>
    %cst = arith.constant dense<0.000000e+00> : vector<8x256xf32>
    %3 = tpu.matmul %1, %2, %cst {dimension_numbers = #tpu.dot_dimension_numbers<[1], [0], [0], [1], [0, 0, 1, 1], [], []>} : vector<8x128xbf16>, vector<128x256xbf16>, vector<8x256xf32> -> vector<8x256xf32>
    %c0_3 = arith.constant 0 : index
    %c0_4 = arith.constant 0 : index
    %4 = vector.load %arg3[%c0_3, %c0_4] : memref<1x256xf32, #tpu.memory_space<vmem>>, vector<1x256xf32>
    %5 = vector.broadcast %4 : vector<1x256xf32> to vector<8x256xf32>
    %6 = arith.addf %3, %5 : vector<8x256xf32>
    %cst_5 = arith.constant 5.000000e-01 : f32
    %7 = vector.broadcast %cst_5 : f32 to vector<8x256xf32>
    %8 = arith.mulf %7, %6 : vector<8x256xf32>
    %cst_6 = arith.constant 0.707106769 : f32
    %9 = vector.broadcast %cst_6 : f32 to vector<8x256xf32>
    %10 = arith.mulf %6, %9 : vector<8x256xf32>
    %11 = math.erf %10 : vector<8x256xf32>
    %cst_7 = arith.constant 1.000000e+00 : f32
    %12 = vector.broadcast %cst_7 : f32 to vector<8x256xf32>
    %13 = arith.addf %12, %11 : vector<8x256xf32>
    %14 = arith.mulf %8, %13 : vector<8x256xf32>
    %15 = arith.truncf %14 : vector<8x256xf32> to vector<8x256xbf16>
    %c0_8 = arith.constant 0 : index
    %c0_9 = arith.constant 0 : index
    %16 = vector.load %arg4[%c0_8, %c0_9] : memref<256x128xbf16, #tpu.memory_space<vmem>>, vector<256x128xbf16>
    %cst_10 = arith.constant dense<0.000000e+00> : vector<8x128xf32>
    %17 = tpu.matmul %15, %16, %cst_10 {dimension_numbers = #tpu.dot_dimension_numbers<[1], [0], [0], [1], [0, 0, 1, 1], [], []>} : vector<8x256xbf16>, vector<256x128xbf16>, vector<8x128xf32> -> vector<8x128xf32>
    %c0_11 = arith.constant 0 : index
    %c0_12 = arith.constant 0 : index
    %18 = vector.load %arg5[%c0_11, %c0_12] : memref<1x128xf32, #tpu.memory_space<vmem>>, vector<1x128xf32>
    %19 = vector.broadcast %18 : vector<1x128xf32> to vector<8x128xf32>
    %20 = arith.addf %17, %19 : vector<8x128xf32>
    %c0_13 = arith.constant 0 : index
    %c0_14 = arith.constant 0 : index
    %21 = vector.load %arg6[%c0_13, %c0_14] : memref<8x128xf32, #tpu.memory_space<vmem>>, vector<8x128xf32>
    tpu.vector_store %arg6[%c0_13, %c0_14], %20 {strides = array<i32>} : memref<8x128xf32, #tpu.memory_space<vmem>>, vector<8x128xf32>,
    return
  }
  func.func @transform_0(%arg0: i32) -> (i32, i32) {
    %c0_i32 = arith.constant 0 : i32
    %c0_i32_0 = arith.constant 0 : i32
    return %arg0, %c0_i32 : i32, i32
  }
  func.func @transform_1(%arg0: i32) -> (i32, i32) {
    %c0_i32 = arith.constant 0 : i32
    %c0_i32_0 = arith.constant 0 : i32
    %c0_i32_1 = arith.constant 0 : i32
    return %c0_i32, %c0_i32_0 : i32, i32
  }
  func.func @transform_2(%arg0: i32) -> (i32, i32) {
    %c0_i32 = arith.constant 0 : i32
    %c0_i32_0 = arith.constant 0 : i32
    %c0_i32_1 = arith.constant 0 : i32
    return %c0_i32, %c0_i32_0 : i32, i32
  }
  func.func @transform_3(%arg0: i32) -> (i32, i32) {
    %c0_i32 = arith.constant 0 : i32
    %c0_i32_0 = arith.constant 0 : i32
    %c0_i32_1 = arith.constant 0 : i32
    return %c0_i32, %c0_i32_0 : i32, i32
  }
  func.func @transform_4(%arg0: i32) -> (i32, i32) {
    %c0_i32 = arith.constant 0 : i32
    %c0_i32_0 = arith.constant 0 : i32
    %c0_i32_1 = arith.constant 0 : i32
    return %c0_i32, %c0_i32_0 : i32, i32
  }
  func.func @transform_5(%arg0: i32) -> (i32, i32) {
    %c0_i32 = arith.constant 0 : i32
    %c0_i32_0 = arith.constant 0 : i32
    return %arg0, %c0_i32 : i32, i32
  }
}

module attributes {stable_mosaic.version = 11 : i64} {
  func.func @feedforward_kernel(%arg0: i32, %arg1: memref<8x128xf32, #tpu.memory_space<vmem>>, %arg2: memref<128x256xbf16, #tpu.memory_space<vmem>>, %arg3: memref<1x256xf32, #tpu.memory_space<vmem>>, %arg4: memref<256x128xbf16, #tpu.memory_space<vmem>>, %arg5: memref<1x128xf32, #tpu.memory_space<vmem>>, %arg6: memref<8x128xf32, #tpu.memory_space<vmem>>) attributes {dimension_semantics = [#tpu.dimension_semantics<parallel>], iteration_bounds = array<i64: 2>, scalar_prefetch = 0 : i64, scratch_operands = 0 : i64, tpu.core_type = #tpu.core_type<tc>, window_params = [{transform_indices = @transform_0, window_bounds = array<i64: 8, 128>}, {pipeline_mode = #tpu.pipeline_mode<synchronous>, transform_indices = @transform_1, window_bounds = array<i64: 128, 256>}, {pipeline_mode = #tpu.pipeline_mode<synchronous>, transform_indices = @transform_2, window_bounds = array<i64: 1, 256>}, {pipeline_mode = #tpu.pipeline_mode<synchronous>, transform_indices = @transform_3, window_bounds = array<i64: 256, 128>}, {pipeline_mode = #tpu.pipeline_mode<synchronous>, transform_indices = @transform_4, window_bounds = array<i64: 1, 128>}, {transform_indices = @transform_5, window_bounds = array<i64: 8, 128>}]} {
    %c0 = arith.constant 0 : index
    %c0_0 = arith.constant 0 : index
    %0 = vector.load %arg1[%c0, %c0_0] : memref<8x128xf32, #tpu.memory_space<vmem>>, vector<8x128xf32>
    %1 = arith.truncf %0 : vector<8x128xf32> to vector<8x128xbf16>
    %c0_1 = arith.constant 0 : index
    %c0_2 = arith.constant 0 : index
    %2 = vector.load %arg2[%c0_1, %c0_2] : memref<128x256xbf16, #tpu.memory_space<vmem>>, vector<128x256xbf16>
    %cst = arith.constant dense<0.000000e+00> : vector<8x256xf32>
    %3 = tpu.matmul %1, %2, %cst {dimension_numbers = #tpu.dot_dimension_numbers<[1], [0], [0], [1], [0, 0, 1, 1], [], []>} : vector<8x128xbf16>, vector<128x256xbf16>, vector<8x256xf32> -> vector<8x256xf32>
    %c0_3 = arith.constant 0 : index
    %c0_4 = arith.constant 0 : index
    %4 = vector.load %arg3[%c0_3, %c0_4] : memref<1x256xf32, #tpu.memory_space<vmem>>, vector<1x256xf32>
    %5 = vector.broadcast %4 : vector<1x256xf32> to vector<8x256xf32>
    %6 = arith.addf %3, %5 : vector<8x256xf32>
    %cst_5 = arith.constant 5.000000e-01 : f32
    %7 = vector.broadcast %cst_5 : f32 to vector<8x256xf32>
    %8 = arith.mulf %7, %6 : vector<8x256xf32>
    %cst_6 = arith.constant 0.707106769 : f32
    %9 = vector.broadcast %cst_6 : f32 to vector<8x256xf32>
    %10 = arith.mulf %6, %9 : vector<8x256xf32>
    %11 = math.erf %10 : vector<8x256xf32>
    %cst_7 = arith.constant 1.000000e+00 : f32
    %12 = vector.broadcast %cst_7 : f32 to vector<8x256xf32>
    %13 = arith.addf %12, %11 : vector<8x256xf32>
    %14 = arith.mulf %8, %13 : vector<8x256xf32>
    %15 = arith.truncf %14 : vector<8x256xf32> to vector<8x256xbf16>
    %c0_8 = arith.constant 0 : index
    %c0_9 = arith.constant 0 : index
    %16 = vector.load %arg4[%c0_8, %c0_9] : memref<256x128xbf16, #tpu.memory_space<vmem>>, vector<256x128xbf16>
    %cst_10 = arith.constant dense<0.000000e+00> : vector<8x128xf32>
    %17 = tpu.matmul %15, %16, %cst_10 {dimension_numbers = #tpu.dot_dimension_numbers<[1], [0], [0], [1], [0, 0, 1, 1], [], []>} : vector<8x256xbf16>, vector<256x128xbf16>, vector<8x128xf32> -> vector<8x128xf32>
    %c0_11 = arith.constant 0 : index
    %c0_12 = arith.constant 0 : index
    %18 = vector.load %arg5[%c0_11, %c0_12] : memref<1x128xf32, #tpu.memory_space<vmem>>, vector<1x128xf32>
    %19 = vector.broadcast %18 : vector<1x128xf32> to vector<8x128xf32>
    %20 = arith.addf %17, %19 : vector<8x128xf32>
    %c0_13 = arith.constant 0 : index
    %c0_14 = arith.constant 0 : index
    %21 = vector.load %arg6[%c0_13, %c0_14] : memref<8x128xf32, #tpu.memory_space<vmem>>, vector<8x128xf32>
    tpu.vector_store %arg6[%c0_13, %c0_14], %20 {strides = array<i32>} : memref<8x128xf32, #tpu.memory_space<vmem>>, vector<8x128xf32>,
    return
  }
  func.func @transform_0(%arg0: i32) -> (i32, i32) {
    %c0_i32 = arith.constant 0 : i32
    %c0_i32_0 = arith.constant 0 : i32
    return %arg0, %c0_i32 : i32, i32
  }
  func.func @transform_1(%arg0: i32) -> (i32, i32) {
    %c0_i32 = arith.constant 0 : i32
    %c0_i32_0 = arith.constant 0 : i32
    %c0_i32_1 = arith.constant 0 : i32
    return %c0_i32, %c0_i32_0 : i32, i32
  }
  func.func @transform_2(%arg0: i32) -> (i32, i32) {
    %c0_i32 = arith.constant 0 : i32
    %c0_i32_0 = arith.constant 0 : i32
    %c0_i32_1 = arith.constant 0 : i32
    return %c0_i32, %c0_i32_0 : i32, i32
  }
  func.func @transform_3(%arg0: i32) -> (i32, i32) {
    %c0_i32 = arith.constant 0 : i32
    %c0_i32_0 = arith.constant 0 : i32
    %c0_i32_1 = arith.constant 0 : i32
    return %c0_i32, %c0_i32_0 : i32, i32
  }
  func.func @transform_4(%arg0: i32) -> (i32, i32) {
    %c0_i32 = arith.constant 0 : i32
    %c0_i32_0 = arith.constant 0 : i32
    %c0_i32_1 = arith.constant 0 : i32
    return %c0_i32, %c0_i32_0 : i32, i32
  }
  func.func @transform_5(%arg0: i32) -> (i32, i32) {
    %c0_i32 = arith.constant 0 : i32
    %c0_i32_0 = arith.constant 0 : i32
    return %arg0, %c0_i32 : i32, i32
  }
}

</mosaic_0001>

<llo_original>
// kernel: tpu_custom_call.1
$region0: #{tpu_custom_call.1}
  #allocation0 [shape = 'u32[]', space=smem, size = 0x4, offset = 0x4, fixed_abs, tag = 'smem constant byte address 0x4 - core index']
  #allocation1 [shape = 'u32[72,128]{1,0:T(1,128)}', space=vmem, size = 0x9000, scoped, tag = 'internal scratch']
  %s0 = inlined_call_operand.hbm [shape: f32[16,128], index: 0, kind: input, shape index: {}]
  %s1 = inlined_call_operand.hbm [shape: bf16[128,256], index: 1, kind: input, shape index: {}]
  %s2 = inlined_call_operand.hbm [shape: f32[1,256], index: 2, kind: input, shape index: {}]
  %s3 = inlined_call_operand.hbm [shape: bf16[256,128], index: 3, kind: input, shape index: {}]
  %s4 = inlined_call_operand.vmem [shape: f32[1,128], index: 4, kind: input, shape index: {}]
  %s5 = inlined_call_operand.hbm [shape: f32[16,128], index: 5, kind: output, shape index: {}]
  %s6 = sld [smem:[#allocation0]]
  $region69: #{tpu_custom_call.1} parent=0
    _
  %s8 = ssub.s32 1, %s6
  %s9 = scalar_select 0, %s8, %s6
  $region1: #{tpu_custom_call.1} parent=0
    #allocation2 [shape = 'u8[8192]{0}', space=vmem, size = 0x2000, scoped, tag = 'input window, operand 0']
    #allocation3 [shape = 's32[2]{0}', space=sflag, size = 0x8, scoped, tag = 'scoped memory for tpu_custom_call.1']
    #allocation4 [shape = 's32[2]{0}', space=sflag, size = 0x8, scoped, tag = 'scoped memory for tpu_custom_call.1']
    #allocation5 [shape = 'u8[65536]{0}', space=vmem, size = 0x10000, scoped, tag = 'input window, operand 1, single buffered']
    #allocation6 [shape = 's32[1]{0}', space=sflag, size = 0x4, scoped, tag = 'scoped memory for tpu_custom_call.1']
    #allocation7 [shape = 'u8[1024]{0}', space=vmem, size = 0x400, scoped, tag = 'input window, operand 2, single buffered']
    #allocation8 [shape = 'u8[65536]{0}', space=vmem, size = 0x10000, scoped, tag = 'input window, operand 3, single buffered']
    #allocation9 [shape = 's32[1]{0}', space=sflag, size = 0x4, scoped, tag = 'scoped memory for tpu_custom_call.1']
    #allocation10 [shape = 'u8[8192]{0}', space=vmem, size = 0x2000, scoped, tag = 'output window, operand 0']
    %10 = vsyncpa [#allocation3], 0
    %s11 = scalar_lea.sflag [#allocation3], 1
    %12 = vsyncpa %s11, 0
    %13 = vsyncpa [#allocation6], 0
    %14 = vsyncpa [#allocation9], 0
    %15 = vsyncpa [#allocation4], 0
    %s16 = scalar_lea.sflag [#allocation4], 1
    %17 = vsyncpa %s16, 0
    loop: start=0, step=1, limit=4
    $region2: #{tpu_custom_call.1} parent=1 // loop_pre_header
      _
    $region3: #{tpu_custom_call.1} parent=1 // loop_header
      %s19 = sphi 0, %s23
      %p20 = scmp.ge.s32.totalorder %s19, 4
      %s29 = sphi 0, %s31
      %s32 = sphi 0, %s29
      %s33 = sphi 0, %s32
      %s49 = sphi 0, %s33
      %s53 = sphi 0, %s53
      %s55 = sphi 0, %s53
      %s56 = sphi 0, %s55
      %s70 = sphi 0, %s56
      %s74 = sphi 0, %s74
      %s76 = sphi 0, %s74
      %s77 = sphi 0, %s76
      %s91 = sphi 0, %s77
      %s95 = sphi 0, %s95
      %s97 = sphi 0, %s95
      %s98 = sphi 0, %s97
      %s112 = sphi 0, %s98
      %s116 = sphi 0, %s116
      %s118 = sphi 0, %s116
      %s119 = sphi 0, %s118
      %s133 = sphi 0, %s119
      %s139 = sphi 0, %s141
      %s142 = sphi 0, %s139
      %s143 = sphi 0, %s142
      %s159 = sphi 0, %s143
    $region4: #{tpu_custom_call.1} parent=1 // loop_header_branch
      %22 = sbr.rel (%p20) target = $region8
    $region5: #{tpu_custom_call.1} parent=1 // loop_body
      %s24 = ssub.s32 %s19, 1
      %s25 = ssub.s32 %s19, 2
      %s26 = sadd.s32 %s19, 1
      %s27 = ssub.s32 %s19, %s26
      %p28 = scmp.eq.s32.totalorder %s27, 0
      %s30 = sadd.s32 %s29, 1
      %s31 = scalar_select %p28, %s29, %s30
      %p34 = pneg %p28
      %p35 = scmp.eq.s32.totalorder %s19, 1
      %p36 = por %p34, %p35
      %p37 = scmp.ne.s32.totalorder %s29, %s32
      %p38 = scmp.eq.s32.totalorder %s19, 0
      %p39 = por %p37, %p38
      %p40 = scmp.ne.s32.totalorder %s29, %s32
      %p41 = scmp.eq.s32.totalorder %s24, 1
      %p42 = por %p40, %p41
      %p43 = scmp.ne.s32.totalorder %s32, %s33
      %p44 = scmp.eq.s32.totalorder %s24, 0
      %p45 = por %p43, %p44
      %p46 = scmp.ne.s32.totalorder %s32, %s33
      %p47 = scmp.eq.s32.totalorder %s25, 1
      %p48 = por %p46, %p47
      %p50 = scmp.ne.s32.totalorder %s33, %s49
      %p51 = scmp.eq.s32.totalorder %s25, 0
      %p52 = por %p50, %p51
      %s54 = sadd.s32 %s53, 1
      %p57 = scmp.eq.s32.totalorder %s19, 1
      %p58 = scmp.ne.s32.totalorder %s53, %s55
      %p59 = scmp.eq.s32.totalorder %s19, 0
      %p60 = por %p58, %p59
      %p61 = scmp.ne.s32.totalorder %s53, %s55
      %p62 = scmp.eq.s32.totalorder %s24, 1
      %p63 = por %p61, %p62
      %p64 = scmp.ne.s32.totalorder %s55, %s56
      %p65 = scmp.eq.s32.totalorder %s24, 0
      %p66 = por %p64, %p65
      %p67 = scmp.ne.s32.totalorder %s55, %s56
      %p68 = scmp.eq.s32.totalorder %s25, 1
      %p69 = por %p67, %p68
      %p71 = scmp.ne.s32.totalorder %s56, %s70
      %p72 = scmp.eq.s32.totalorder %s25, 0
      %p73 = por %p71, %p72
      %s75 = sadd.s32 %s74, 1
      %p78 = scmp.eq.s32.totalorder %s19, 1
      %p79 = scmp.ne.s32.totalorder %s74, %s76
      %p80 = scmp.eq.s32.totalorder %s19, 0
      %p81 = por %p79, %p80
      %p82 = scmp.ne.s32.totalorder %s74, %s76
      %p83 = scmp.eq.s32.totalorder %s24, 1
      %p84 = por %p82, %p83
      %p85 = scmp.ne.s32.totalorder %s76, %s77
      %p86 = scmp.eq.s32.totalorder %s24, 0
      %p87 = por %p85, %p86
      %p88 = scmp.ne.s32.totalorder %s76, %s77
      %p89 = scmp.eq.s32.totalorder %s25, 1
      %p90 = por %p88, %p89
      %p92 = scmp.ne.s32.totalorder %s77, %s91
      %p93 = scmp.eq.s32.totalorder %s25, 0
      %p94 = por %p92, %p93
      %s96 = sadd.s32 %s95, 1
      %p99 = scmp.eq.s32.totalorder %s19, 1
      %p100 = scmp.ne.s32.totalorder %s95, %s97
      %p101 = scmp.eq.s32.totalorder %s19, 0
      %p102 = por %p100, %p101
      %p103 = scmp.ne.s32.totalorder %s95, %s97
      %p104 = scmp.eq.s32.totalorder %s24, 1
      %p105 = por %p103, %p104
      %p106 = scmp.ne.s32.totalorder %s97, %s98
      %p107 = scmp.eq.s32.totalorder %s24, 0
      %p108 = por %p106, %p107
      %p109 = scmp.ne.s32.totalorder %s97, %s98
      %p110 = scmp.eq.s32.totalorder %s25, 1
      %p111 = por %p109, %p110
      %p113 = scmp.ne.s32.totalorder %s98, %s112
      %p114 = scmp.eq.s32.totalorder %s25, 0
      %p115 = por %p113, %p114
      %s117 = sadd.s32 %s116, 1
      %p120 = scmp.eq.s32.totalorder %s19, 1
      %p121 = scmp.ne.s32.totalorder %s116, %s118
      %p122 = scmp.eq.s32.totalorder %s19, 0
      %p123 = por %p121, %p122
      %p124 = scmp.ne.s32.totalorder %s116, %s118
      %p125 = scmp.eq.s32.totalorder %s24, 1
      %p126 = por %p124, %p125
      %p127 = scmp.ne.s32.totalorder %s118, %s119
      %p128 = scmp.eq.s32.totalorder %s24, 0
      %p129 = por %p127, %p128
      %p130 = scmp.ne.s32.totalorder %s118, %s119
      %p131 = scmp.eq.s32.totalorder %s25, 1
      %p132 = por %p130, %p131
      %p134 = scmp.ne.s32.totalorder %s119, %s133
      %p135 = scmp.eq.s32.totalorder %s25, 0
      %p136 = por %p134, %p135
      %s137 = ssub.s32 %s19, %s26
      %p138 = scmp.eq.s32.totalorder %s137, 0
      %s140 = sadd.s32 %s139, 1
      %s141 = scalar_select %p138, %s139, %s140
      %p144 = pneg %p138
      %p145 = scmp.eq.s32.totalorder %s19, 1
      %p146 = por %p144, %p145
      %p147 = scmp.ne.s32.totalorder %s139, %s142
      %p148 = scmp.eq.s32.totalorder %s19, 0
      %p149 = por %p147, %p148
      %p150 = scmp.ne.s32.totalorder %s139, %s142
      %p151 = scmp.eq.s32.totalorder %s24, 1
      %p152 = por %p150, %p151
      %p153 = scmp.ne.s32.totalorder %s142, %s143
      %p154 = scmp.eq.s32.totalorder %s24, 0
      %p155 = por %p153, %p154
      %p156 = scmp.ne.s32.totalorder %s142, %s143
      %p157 = scmp.eq.s32.totalorder %s25, 1
      %p158 = por %p156, %p157
      %p160 = scmp.ne.s32.totalorder %s143, %s159
      %p161 = scmp.eq.s32.totalorder %s25, 0
      %p162 = por %p160, %p161
      %p163 = scmp.le.s32.totalorder 1, %s19
      %p164 = scmp.lt.s32.totalorder %s19, 3
      %p165 = pnand %p163, %p164
      %p166 = pneg %p165
      // Predicated region
      $region9: #{tpu_custom_call.1} parent=5 // pred_check
        _
      $region10: #{tpu_custom_call.1} parent=5 // pred_check_branch
        %168 = sbr.rel (%p165) target = $region12
      $region11: #{tpu_custom_call.1} parent=5 // pred_region
        %s169 = ssub.s32 %s19, 1
        // Predicated region
        $region13: #{tpu_custom_call.1} parent=11 // pred_check
          %p170 = pneg %p66
        $region14: #{tpu_custom_call.1} parent=11 // pred_check_branch
          %172 = sbr.rel (%p170) target = $region16
        $region15: #{tpu_custom_call.1} parent=11 // pred_region
          %174 = vsyncadd [#allocation6], 0
          %s175 = sshll.u32 %s1, 4
          %s176 = int_to_ptr.hbm [resolvable:$true] %s175
          %s177 = sshll.u32 [#allocation5], 4
          %s178 = int_to_ptr.vmem [resolvable:$true] %s177
          %183 = dma.hbm_to_vmem [thread:$0]  %s176, 2048, %s178, [#allocation6], 128, 128, 8
        $region16: #{tpu_custom_call.1} parent=11 // pred_fallthru
          _
        // Predicated region
        $region17: #{tpu_custom_call.1} parent=11 // pred_check
          %p184 = pneg %p87
        $region18: #{tpu_custom_call.1} parent=11 // pred_check_branch
          %186 = sbr.rel (%p184) target = $region20
        $region19: #{tpu_custom_call.1} parent=11 // pred_region
          %188 = vsyncadd [#allocation6], 0
          %s190 = sshll.u32 %s2, 4
          %s191 = int_to_ptr.hbm [resolvable:$true] %s190
          %s192 = sshll.u32 [#allocation7], 4
          %s193 = int_to_ptr.vmem [resolvable:$true] %s192
          %195 = dma.hbm_to_vmem [thread:$0]  %s191, 32, %s193, [#allocation6]
        $region20: #{tpu_custom_call.1} parent=11 // pred_fallthru
          _
        // Predicated region
        $region21: #{tpu_custom_call.1} parent=11 // pred_check
          %p196 = pneg %p108
        $region22: #{tpu_custom_call.1} parent=11 // pred_check_branch
          %198 = sbr.rel (%p196) target = $region24
        $region23: #{tpu_custom_call.1} parent=11 // pred_region
          %200 = vsyncadd [#allocation9], 0
          %s201 = sshll.u32 %s3, 4
          %s202 = int_to_ptr.hbm [resolvable:$true] %s201
          %s203 = sshll.u32 [#allocation8], 4
          %s204 = int_to_ptr.vmem [resolvable:$true] %s203
          %209 = dma.hbm_to_vmem [thread:$0]  %s202, 2048, %s204, [#allocation9], 64, 64, 4
        $region24: #{tpu_custom_call.1} parent=11 // pred_fallthru
          _
        // Predicated region
        $region25: #{tpu_custom_call.1} parent=11 // pred_check
          %p210 = pneg %p129
        $region26: #{tpu_custom_call.1} parent=11 // pred_check_branch
          %212 = sbr.rel (%p210) target = $region28
        $region27: #{tpu_custom_call.1} parent=11 // pred_region
          _
        $region28: #{tpu_custom_call.1} parent=11 // pred_fallthru
          _
      $region12: #{tpu_custom_call.1} parent=5 // pred_fallthru
        _
      %p213 = scmp.lt.s32.totalorder %s19, 2
      // Predicated region
      $region29: #{tpu_custom_call.1} parent=5 // pred_check
        %p214 = pneg %p213
      $region30: #{tpu_custom_call.1} parent=5 // pred_check_branch
        %216 = sbr.rel (%p214) target = $region32
      $region31: #{tpu_custom_call.1} parent=5 // pred_region
        // Predicated region
        $region33: #{tpu_custom_call.1} parent=31 // pred_check
          %p217 = pneg %p39
        $region34: #{tpu_custom_call.1} parent=31 // pred_check_branch
          %219 = sbr.rel (%p217) target = $region36
        $region35: #{tpu_custom_call.1} parent=31 // pred_region
          %s220 = sand.u32 %s29, 1
          %s221 = scalar_lea.sflag [#allocation3], %s220
          %s222 = sand.u32 %s29, 1
          %s223 = smul.addr %s222, 8
          %s224 = scalar_lea.vmem [#allocation2], %s223
          %226 = vsyncadd %s221, 0
          %s227 = smul.addr %s19, 8
          %s228 = scalar_lea.hbm %s0, %s227
          %s230 = sshll.u32 %s228, 4
          %s231 = int_to_ptr.hbm [resolvable:$true] %s230
          %s232 = sshll.u32 %s224, 4
          %s233 = int_to_ptr.vmem [resolvable:$true] %s232
          %235 = dma.hbm_to_vmem [thread:$0]  %s231, 128, %s233, %s221
        $region36: #{tpu_custom_call.1} parent=31 // pred_fallthru
          _
      $region32: #{tpu_custom_call.1} parent=5 // pred_fallthru
        _
      %p236 = scmp.le.s32.totalorder 1, %s19
      %p237 = scmp.lt.s32.totalorder %s19, 3
      %p238 = pnand %p236, %p237
      %p239 = pneg %p238
      // Predicated region
      $region37: #{tpu_custom_call.1} parent=5 // pred_check
        _
      $region38: #{tpu_custom_call.1} parent=5 // pred_check_branch
        %241 = sbr.rel (%p238) target = $region40
      $region39: #{tpu_custom_call.1} parent=5 // pred_region
        %s242 = ssub.s32 %s19, 1
        %s243 = sand.u32 %s32, 1
        %s244 = scalar_lea.sflag [#allocation3], %s243
        %s245 = sand.u32 %s32, 1
        %s246 = smul.addr %s245, 8
        %s247 = scalar_lea.vmem [#allocation2], %s246
        // Predicated region
        $region41: #{tpu_custom_call.1} parent=39 // pred_check
          %p248 = pneg %p45
        $region42: #{tpu_custom_call.1} parent=39 // pred_check_branch
          %250 = sbr.rel (%p248) target = $region44
        $region43: #{tpu_custom_call.1} parent=39 // pred_region
          %252 = dma.done %s244, 128
        $region44: #{tpu_custom_call.1} parent=39 // pred_fallthru
          _
        // Predicated region
        $region45: #{tpu_custom_call.1} parent=39 // pred_check
          %p253 = pneg %p66
        $region46: #{tpu_custom_call.1} parent=39 // pred_check_branch
          %255 = sbr.rel (%p253) target = $region48
        $region47: #{tpu_custom_call.1} parent=39 // pred_region
          %257 = dma.done [#allocation6], 2048
        $region48: #{tpu_custom_call.1} parent=39 // pred_fallthru
          _
        // Predicated region
        $region49: #{tpu_custom_call.1} parent=39 // pred_check
          %p258 = pneg %p87
        $region50: #{tpu_custom_call.1} parent=39 // pred_check_branch
          %260 = sbr.rel (%p258) target = $region52
        $region51: #{tpu_custom_call.1} parent=39 // pred_region
          %262 = dma.done [#allocation6], 32
        $region52: #{tpu_custom_call.1} parent=39 // pred_fallthru
          _
        // Predicated region
        $region53: #{tpu_custom_call.1} parent=39 // pred_check
          %p263 = pneg %p108
        $region54: #{tpu_custom_call.1} parent=39 // pred_check_branch
          %265 = sbr.rel (%p263) target = $region56
        $region55: #{tpu_custom_call.1} parent=39 // pred_region
          %267 = dma.done [#allocation9], 2048
        $region56: #{tpu_custom_call.1} parent=39 // pred_fallthru
          _
        %s268 = sand.u32 %s32, 1
        %s269 = scalar_lea.sflag [#allocation3], %s268
        %s270 = sand.u32 %s32, 1
        %s271 = smul.addr %s270, 8
        %s272 = scalar_lea.vmem [#allocation2], %s271
        %p273 = pneg %p45
        %p274 = pneg %p42
        %p275 = pneg %p66
        %p276 = pneg %p63
        %p277 = pneg %p87
        %p278 = pneg %p84
        %p279 = pneg %p108
        %p280 = pneg %p105
        %p281 = pneg %p129
        %p282 = pneg %p126
        %p283 = pneg %p155
        %p284 = pneg %p152
        %s285 = sand.u32 %s142, 1
        %s286 = scalar_lea.sflag [#allocation4], %s285
        %s287 = sand.u32 %s142, 1
        %s288 = smul.addr %s287, 8
        %s289 = scalar_lea.vmem [#allocation10], %s288
        %v290 = vld [vmem:[%s247] sm:$0xff]
        %v291 = vpack.c.bf16 %v290, %v290
        %v292 = vld [vmem:[#allocation5] sm:$0xff]
        %v293 = vld [vmem:[#allocation5 + $0x8] sm:$0xff]
        %v294 = vld [vmem:[#allocation5 + $0x10] sm:$0xff]
        %v295 = vld [vmem:[#allocation5 + $0x18] sm:$0xff]
        %v296 = vld [vmem:[#allocation5 + $0x20] sm:$0xff]
        %v297 = vld [vmem:[#allocation5 + $0x28] sm:$0xff]
        %v298 = vld [vmem:[#allocation5 + $0x30] sm:$0xff]
        %v299 = vld [vmem:[#allocation5 + $0x38] sm:$0xff]
        %v300 = vld [vmem:[#allocation5 + $0x40] sm:$0xff]
        %v301 = vld [vmem:[#allocation5 + $0x48] sm:$0xff]
        %v302 = vld [vmem:[#allocation5 + $0x50] sm:$0xff]
        %v303 = vld [vmem:[#allocation5 + $0x58] sm:$0xff]
        %v304 = vld [vmem:[#allocation5 + $0x60] sm:$0xff]
        %v305 = vld [vmem:[#allocation5 + $0x68] sm:$0xff]
        %v306 = vld [vmem:[#allocation5 + $0x70] sm:$0xff]
        %v307 = vld [vmem:[#allocation5 + $0x78] sm:$0xff]
        %v308 = vld [vmem:[#allocation7] sm:$0x3]
        %v310 = vperm.slane %v308, 0
        %v311 = vperm.slane %v308, 1
        %v330 = vunpack.c.l.b16 %v292
        %v331 = vunpack.c.h.b16 %v292
        %v332 = vunpack.c.l.b16 %v293
        %v333 = vunpack.c.h.b16 %v293
        %v334 = vunpack.c.l.b16 %v294
        %v335 = vunpack.c.h.b16 %v294
        %v336 = vunpack.c.l.b16 %v295
        %v337 = vunpack.c.h.b16 %v295
        %v338 = vunpack.c.l.b16 %v296
        %v339 = vunpack.c.h.b16 %v296
        %v340 = vunpack.c.l.b16 %v297
        %v341 = vunpack.c.h.b16 %v297
        %v342 = vunpack.c.l.b16 %v298
        %v343 = vunpack.c.h.b16 %v298
        %v344 = vunpack.c.l.b16 %v299
        %v345 = vunpack.c.h.b16 %v299
        %v346 = vunpack.c.l.b16 %v300
        %v347 = vunpack.c.h.b16 %v300
        %v348 = vunpack.c.l.b16 %v301
        %v349 = vunpack.c.h.b16 %v301
        %v350 = vunpack.c.l.b16 %v302
        %v351 = vunpack.c.h.b16 %v302
        %v352 = vunpack.c.l.b16 %v303
        %v353 = vunpack.c.h.b16 %v303
        %v354 = vunpack.c.l.b16 %v304
        %v355 = vunpack.c.h.b16 %v304
        %v356 = vunpack.c.l.b16 %v305
        %v357 = vunpack.c.h.b16 %v305
        %v358 = vunpack.c.l.b16 %v306
        %v359 = vunpack.c.h.b16 %v306
        %v360 = vunpack.c.l.b16 %v307
        %v361 = vunpack.c.h.b16 %v307
        %v362 = vpack.c.b16 %v332, %v330
        %v363 = vpack.c.b16 %v333, %v331
        %v364 = vpack.c.b16 %v336, %v334
        %v365 = vpack.c.b16 %v337, %v335
        %v366 = vpack.c.b16 %v340, %v338
        %v367 = vpack.c.b16 %v341, %v339
        %v368 = vpack.c.b16 %v344, %v342
        %v369 = vpack.c.b16 %v345, %v343
        %v370 = vpack.c.b16 %v348, %v346
        %v371 = vpack.c.b16 %v349, %v347
        %v372 = vpack.c.b16 %v352, %v350
        %v373 = vpack.c.b16 %v353, %v351
        %v374 = vpack.c.b16 %v356, %v354
        %v375 = vpack.c.b16 %v357, %v355
        %v376 = vpack.c.b16 %v360, %v358
        %v377 = vpack.c.b16 %v361, %v359
        %394 = vmatpush.bf16.msra.mxu0 %v376
        %395 = vmatpush.bf16.msra.mxu0 %v374
        %396 = vmatpush.bf16.msra.mxu0 %v372
        %397 = vmatpush.bf16.msra.mxu0 %v370
        %398 = vmatpush.bf16.msra.mxu0 %v368
        %399 = vmatpush.bf16.msra.mxu0 %v366
        %400 = vmatpush.bf16.msra.mxu0 %v364
        %401 = vmatpush.bf16.msra.mxu0 %v362
        %402 = vmatmul.bf16.gmra.mxu0 %v291
        %v403 = vpop.f32.mrf.mxu0
        %v404 = vadd.f32 %v310, %v403
        %v405 = vpop.f32.mrf.mxu0
        %406 = vdwg.mxu0
        %407 = vmatpush.bf16.msra.mxu0 %v377
        %408 = vmatpush.bf16.msra.mxu0 %v375
        %409 = vmatpush.bf16.msra.mxu0 %v373
        %410 = vmatpush.bf16.msra.mxu0 %v371
        %411 = vmatpush.bf16.msra.mxu0 %v369
        %412 = vmatpush.bf16.msra.mxu0 %v367
        %413 = vmatpush.bf16.msra.mxu0 %v365
        %414 = vmatpush.bf16.msra.mxu0 %v363
        %415 = vmatmul.bf16.gmra.mxu0 %v291
        %v416 = vpop.f32.mrf.mxu0
        %v417 = vadd.f32 %v311, %v416
        %v418 = vpop.f32.mrf.mxu0
        %419 = vdwg.mxu0
        %v420 = vmul.f32 %v404, 0.5
        %v421 = vmul.f32 %v417, 0.5
        %v422 = vmul.f32 %v404, 0.70710677
        %v423 = vmul.f32 %v417, 0.70710677
        %v424 = vmul.f32 %v422, %v422
        %v425 = vmin.f32 16.0, %v424
        %v426 = vmul.f32 %v425, 2.1237322e-06
        %v427 = vadd.f32 %v426, 0.00028619796
        %v428 = vmul.f32 %v425, %v427
        %v429 = vadd.f32 %v428, 0.0036580483
        %v430 = vmul.f32 %v425, %v429
        %v431 = vadd.f32 %v430, 0.05243302
        %v432 = vmul.f32 %v425, %v431
        %v433 = vadd.f32 %v432, 0.18741608
        %v434 = vmul.f32 %v425, %v433
        %v435 = vadd.f32 %v434, 1.1283791
        %v436 = vmul.f32 %v422, %v435
        %v437 = vmul.f32 %v425, 3.8918573e-05
        %v438 = vadd.f32 %v437, 0.001143296
        %v439 = vmul.f32 %v425, %v438
        %v440 = vadd.f32 %v439, 0.014752088
        %v441 = vmul.f32 %v425, %v440
        %v442 = vadd.f32 %v441, 0.112945676
        %v443 = vmul.f32 %v425, %v442
        %v444 = vadd.f32 %v443, 0.4994258
        %v445 = vmul.f32 %v425, %v444
        %v446 = vadd.f32 %v445, 1.0
        %v447 = vrcp.pop %v446
        %v448 = vmul.f32 %v446, %v447
        %v449 = vsub.f32 1.0, %v448
        %v450 = vmul.f32 %v447, %v449
        %v451 = vadd.f32 %v447, %v450
        %vm452 = vweird.f32 %v446
        %vm453 = vweird.f32 %v447
        %vm454 = vmor %vm452, %vm453
        %v455 = vsel %vm454, %v447, %v451
        %v456 = vand.u32 2147483647, %v446
        %vm457 = vcmp.eq.f32.partialorder %v456, 8.507059e+37
        %v458 = vand.u32 %v446, 2147483648
        %v459 = vor.u32 1.1754944e-38, %v458
        %v460 = vsel %vm457, %v459, %v455
        %v461 = vmul.f32 %v436, %v460
        %v462 = vmin.f32 %v461, 1.0
        %v463 = vmax.f32 %v462, -1.0
        %v464 = vmul.f32 %v423, %v423
        %v465 = vmin.f32 16.0, %v464
        %v466 = vmul.f32 %v465, 2.1237322e-06
        %v467 = vadd.f32 %v466, 0.00028619796
        %v468 = vmul.f32 %v465, %v467
        %v469 = vadd.f32 %v468, 0.0036580483
        %v470 = vmul.f32 %v465, %v469
        %v471 = vadd.f32 %v470, 0.05243302
        %v472 = vmul.f32 %v465, %v471
        %v473 = vadd.f32 %v472, 0.18741608
        %v474 = vmul.f32 %v465, %v473
        %v475 = vadd.f32 %v474, 1.1283791
        %v476 = vmul.f32 %v423, %v475
        %v477 = vmul.f32 %v465, 3.8918573e-05
        %v478 = vadd.f32 %v477, 0.001143296
        %v479 = vmul.f32 %v465, %v478
        %v480 = vadd.f32 %v479, 0.014752088
        %v481 = vmul.f32 %v465, %v480
        %v482 = vadd.f32 %v481, 0.112945676
        %v483 = vmul.f32 %v465, %v482
        %v484 = vadd.f32 %v483, 0.4994258
        %v485 = vmul.f32 %v465, %v484
        %v486 = vadd.f32 %v485, 1.0
        %v487 = vrcp.pop %v486
        %v488 = vmul.f32 %v486, %v487
        %v489 = vsub.f32 1.0, %v488
        %v490 = vmul.f32 %v487, %v489
        %v491 = vadd.f32 %v487, %v490
        %vm492 = vweird.f32 %v486
        %vm493 = vweird.f32 %v487
        %vm494 = vmor %vm492, %vm493
        %v495 = vsel %vm494, %v487, %v491
        %v496 = vand.u32 2147483647, %v486
        %vm497 = vcmp.eq.f32.partialorder %v496, 8.507059e+37
        %v498 = vand.u32 %v486, 2147483648
        %v499 = vor.u32 1.1754944e-38, %v498
        %v500 = vsel %vm497, %v499, %v495
        %v501 = vmul.f32 %v476, %v500
        %v502 = vmin.f32 %v501, 1.0
        %v503 = vmax.f32 %v502, -1.0
        %v504 = vadd.f32 %v463, 1.0
        %v505 = vadd.f32 %v503, 1.0
        %v506 = vmul.f32 %v420, %v504
        %v507 = vmul.f32 %v421, %v505
        %v508 = vpack.c.bf16 %v506, %v506
        %v509 = vpack.c.bf16 %v507, %v507
        %v510 = vld [vmem:[#allocation8] sm:$0xf]
        %v511 = vld [vmem:[#allocation8 + $0x4] sm:$0xf]
        %v512 = vld [vmem:[#allocation8 + $0x8] sm:$0xf]
        %v513 = vld [vmem:[#allocation8 + $0xc] sm:$0xf]
        %v514 = vld [vmem:[#allocation8 + $0x10] sm:$0xf]
        %v515 = vld [vmem:[#allocation8 + $0x14] sm:$0xf]
        %v516 = vld [vmem:[#allocation8 + $0x18] sm:$0xf]
        %v517 = vld [vmem:[#allocation8 + $0x1c] sm:$0xf]
        %v518 = vld [vmem:[#allocation8 + $0x20] sm:$0xf]
        %v519 = vld [vmem:[#allocation8 + $0x24] sm:$0xf]
        %v520 = vld [vmem:[#allocation8 + $0x28] sm:$0xf]
        %v521 = vld [vmem:[#allocation8 + $0x2c] sm:$0xf]
        %v522 = vld [vmem:[#allocation8 + $0x30] sm:$0xf]
        %v523 = vld [vmem:[#allocation8 + $0x34] sm:$0xf]
        %v524 = vld [vmem:[#allocation8 + $0x38] sm:$0xf]
        %v525 = vld [vmem:[#allocation8 + $0x3c] sm:$0xf]
        %v526 = vld [vmem:[#allocation8 + $0x40] sm:$0xf]
        %v527 = vld [vmem:[#allocation8 + $0x44] sm:$0xf]
        %v528 = vld [vmem:[#allocation8 + $0x48] sm:$0xf]
        %v529 = vld [vmem:[#allocation8 + $0x4c] sm:$0xf]
        %v530 = vld [vmem:[#allocation8 + $0x50] sm:$0xf]
        %v531 = vld [vmem:[#allocation8 + $0x54] sm:$0xf]
        %v532 = vld [vmem:[#allocation8 + $0x58] sm:$0xf]
        %v533 = vld [vmem:[#allocation8 + $0x5c] sm:$0xf]
        %v534 = vld [vmem:[#allocation8 + $0x60] sm:$0xf]
        %v535 = vld [vmem:[#allocation8 + $0x64] sm:$0xf]
        %v536 = vld [vmem:[#allocation8 + $0x68] sm:$0xf]
        %v537 = vld [vmem:[#allocation8 + $0x6c] sm:$0xf]
        %v538 = vld [vmem:[#allocation8 + $0x70] sm:$0xf]
        %v539 = vld [vmem:[#allocation8 + $0x74] sm:$0xf]
        %v540 = vld [vmem:[#allocation8 + $0x78] sm:$0xf]
        %v541 = vld [vmem:[#allocation8 + $0x7c] sm:$0xf]
        %v542 = vld [vmem:[%s4] sm:$0x1]
        %v544 = vperm.slane %v542, 0
        %v578 = vunpack.c.l.b16 %v510
        %v579 = vunpack.c.l.b16 %v511
        %v580 = vunpack.c.l.b16 %v512
        %v581 = vunpack.c.l.b16 %v513
        %v582 = vunpack.c.l.b16 %v514
        %v583 = vunpack.c.l.b16 %v515
        %v584 = vunpack.c.l.b16 %v516
        %v585 = vunpack.c.l.b16 %v517
        %v586 = vunpack.c.l.b16 %v518
        %v587 = vunpack.c.l.b16 %v519
        %v588 = vunpack.c.l.b16 %v520
        %v589 = vunpack.c.l.b16 %v521
        %v590 = vunpack.c.l.b16 %v522
        %v591 = vunpack.c.l.b16 %v523
        %v592 = vunpack.c.l.b16 %v524
        %v593 = vunpack.c.l.b16 %v525
        %v594 = vunpack.c.l.b16 %v526
        %v595 = vunpack.c.l.b16 %v527
        %v596 = vunpack.c.l.b16 %v528
        %v597 = vunpack.c.l.b16 %v529
        %v598 = vunpack.c.l.b16 %v530
        %v599 = vunpack.c.l.b16 %v531
        %v600 = vunpack.c.l.b16 %v532
        %v601 = vunpack.c.l.b16 %v533
        %v602 = vunpack.c.l.b16 %v534
        %v603 = vunpack.c.l.b16 %v535
        %v604 = vunpack.c.l.b16 %v536
        %v605 = vunpack.c.l.b16 %v537
        %v606 = vunpack.c.l.b16 %v538
        %v607 = vunpack.c.l.b16 %v539
        %v608 = vunpack.c.l.b16 %v540
        %v609 = vunpack.c.l.b16 %v541
        %v610 = vpack.c.b16 %v579, %v578
        %v611 = vpack.c.b16 %v581, %v580
        %v612 = vpack.c.b16 %v583, %v582
        %v613 = vpack.c.b16 %v585, %v584
        %v614 = vpack.c.b16 %v587, %v586
        %v615 = vpack.c.b16 %v589, %v588
        %v616 = vpack.c.b16 %v591, %v590
        %v617 = vpack.c.b16 %v593, %v592
        %v618 = vpack.c.b16 %v595, %v594
        %v619 = vpack.c.b16 %v597, %v596
        %v620 = vpack.c.b16 %v599, %v598
        %v621 = vpack.c.b16 %v601, %v600
        %v622 = vpack.c.b16 %v603, %v602
        %v623 = vpack.c.b16 %v605, %v604
        %v624 = vpack.c.b16 %v607, %v606
        %v625 = vpack.c.b16 %v609, %v608
        %642 = vmatpush.bf16.msra.mxu0 %v617
        %643 = vmatpush.bf16.msra.mxu0 %v616
        %644 = vmatpush.bf16.msra.mxu0 %v615
        %645 = vmatpush.bf16.msra.mxu0 %v614
        %646 = vmatpush.bf16.msra.mxu0 %v613
        %647 = vmatpush.bf16.msra.mxu0 %v612
        %648 = vmatpush.bf16.msra.mxu0 %v611
        %649 = vmatpush.bf16.msra.mxu0 %v610
        %650 = vmatmul.bf16.gmra.mxu0 %v508
        %v651 = vpop.f32.mrf.mxu0
        %v652 = vadd.f32 %v544, %v651
        %v653 = vpop.f32.mrf.mxu0
        %654 = vdwg.mxu0
        %655 = vmatpush.bf16.msra.mxu0 %v625
        %656 = vmatpush.bf16.msra.mxu0 %v624
        %657 = vmatpush.bf16.msra.mxu0 %v623
        %658 = vmatpush.bf16.msra.mxu0 %v622
        %659 = vmatpush.bf16.msra.mxu0 %v621
        %660 = vmatpush.bf16.msra.mxu0 %v620
        %661 = vmatpush.bf16.msra.mxu0 %v619
        %662 = vmatpush.bf16.msra.mxu0 %v618
        %663 = vmatmul.bf16.gmra.mxu0 %v509
        %v664 = vpop.f32.mrf.mxu0
        %v665 = vadd.f32 %v652, %v664
        %v666 = vpop.f32.mrf.mxu0
        %667 = vdwg.mxu0
        %668 = vst [vmem:[%s289] sm:$0xff] %v665
        %s669 = sand.u32 %s142, 1
        %s670 = scalar_lea.sflag [#allocation4], %s669
        %s671 = sand.u32 %s142, 1
        %s672 = smul.addr %s671, 8
        %s673 = scalar_lea.vmem [#allocation10], %s672
        // Predicated region
        $region57: #{tpu_custom_call.1} parent=39 // pred_check
          %p674 = pneg %p152
        $region58: #{tpu_custom_call.1} parent=39 // pred_check_branch
          %676 = sbr.rel (%p674) target = $region60
        $region59: #{tpu_custom_call.1} parent=39 // pred_region
          %678 = vsyncadd %s670, 0
          %s679 = smul.addr %s24, 8
          %s680 = scalar_lea.hbm %s5, %s679
          %s682 = sshll.u32 %s673, 4
          %s683 = int_to_ptr.vmem [resolvable:$true] %s682
          %s684 = sshll.u32 %s680, 4
          %s685 = int_to_ptr.hbm [resolvable:$true] %s684
          %687 = dma.vmem_to_hbm [thread:$0]  %s683, 128, %s685, %s670
        $region60: #{tpu_custom_call.1} parent=39 // pred_fallthru
          _
      $region40: #{tpu_custom_call.1} parent=5 // pred_fallthru
        _
      %p688 = scmp.le.s32.totalorder 2, %s19
      // Predicated region
      $region61: #{tpu_custom_call.1} parent=5 // pred_check
        %p689 = pneg %p688
      $region62: #{tpu_custom_call.1} parent=5 // pred_check_branch
        %691 = sbr.rel (%p689) target = $region64
      $region63: #{tpu_custom_call.1} parent=5 // pred_region
        %s692 = ssub.s32 %s19, 2
        // Predicated region
        $region65: #{tpu_custom_call.1} parent=63 // pred_check
          %p693 = pneg %p158
        $region66: #{tpu_custom_call.1} parent=63 // pred_check_branch
          %695 = sbr.rel (%p693) target = $region68
        $region67: #{tpu_custom_call.1} parent=63 // pred_region
          %s696 = sand.u32 %s143, 1
          %s697 = scalar_lea.sflag [#allocation4], %s696
          %s698 = sand.u32 %s143, 1
          %s699 = smul.addr %s698, 8
          %s700 = scalar_lea.vmem [#allocation10], %s699
          %702 = dma.done %s697, 128
        $region68: #{tpu_custom_call.1} parent=63 // pred_fallthru
          _
      $region64: #{tpu_custom_call.1} parent=5 // pred_fallthru
        _
    $region6: #{tpu_custom_call.1} parent=1 // loop_footer
      %s23 = sadd.s32 1, %s19
    $region7: #{tpu_custom_call.1} parent=1 // loop_footer_branch
      %18 = sbr.rel target = $region3
    $region8: #{tpu_custom_call.1} parent=1 // loop_exit
      _
    %703 = vsyncpa [#allocation3], 1
    %s704 = scalar_lea.sflag [#allocation3], 1
    %705 = vsyncpa %s704, 1
    %706 = vsyncpa [#allocation6], 1
    %707 = vsyncpa [#allocation9], 1
    %708 = vsyncpa [#allocation4], 1
    %s709 = scalar_lea.sflag [#allocation4], 1
    %710 = vsyncpa %s709, 1

// kernel: tpu_custom_call.1
$region0: #{tpu_custom_call.1}
  #allocation0 [shape = 'u32[]', space=smem, size = 0x4, offset = 0x4, fixed_abs, tag = 'smem constant byte address 0x4 - core index']
  #allocation1 [shape = 'u32[72,128]{1,0:T(1,128)}', space=vmem, size = 0x9000, scoped, tag = 'internal scratch']
  %s0 = inlined_call_operand.hbm [shape: f32[16,128], index: 0, kind: input, shape index: {}]
  %s1 = inlined_call_operand.hbm [shape: bf16[128,256], index: 1, kind: input, shape index: {}]
  %s2 = inlined_call_operand.hbm [shape: f32[1,256], index: 2, kind: input, shape index: {}]
  %s3 = inlined_call_operand.hbm [shape: bf16[256,128], index: 3, kind: input, shape index: {}]
  %s4 = inlined_call_operand.vmem [shape: f32[1,128], index: 4, kind: input, shape index: {}]
  %s5 = inlined_call_operand.hbm [shape: f32[16,128], index: 5, kind: output, shape index: {}]
  %s6 = sld [smem:[#allocation0]]
  $region69: #{tpu_custom_call.1} parent=0
    _
  %s8 = ssub.s32 1, %s6
  %s9 = scalar_select 0, %s8, %s6
  $region1: #{tpu_custom_call.1} parent=0
    #allocation2 [shape = 'u8[8192]{0}', space=vmem, size = 0x2000, scoped, tag = 'input window, operand 0']
    #allocation3 [shape = 's32[2]{0}', space=sflag, size = 0x8, scoped, tag = 'scoped memory for tpu_custom_call.1']
    #allocation4 [shape = 's32[2]{0}', space=sflag, size = 0x8, scoped, tag = 'scoped memory for tpu_custom_call.1']
    #allocation5 [shape = 'u8[65536]{0}', space=vmem, size = 0x10000, scoped, tag = 'input window, operand 1, single buffered']
    #allocation6 [shape = 's32[1]{0}', space=sflag, size = 0x4, scoped, tag = 'scoped memory for tpu_custom_call.1']
    #allocation7 [shape = 'u8[1024]{0}', space=vmem, size = 0x400, scoped, tag = 'input window, operand 2, single buffered']
    #allocation8 [shape = 'u8[65536]{0}', space=vmem, size = 0x10000, scoped, tag = 'input window, operand 3, single buffered']
    #allocation9 [shape = 's32[1]{0}', space=sflag, size = 0x4, scoped, tag = 'scoped memory for tpu_custom_call.1']
    #allocation10 [shape = 'u8[8192]{0}', space=vmem, size = 0x2000, scoped, tag = 'output window, operand 0']
    %10 = vsyncpa [#allocation3], 0
    %s11 = scalar_lea.sflag [#allocation3], 1
    %12 = vsyncpa %s11, 0
    %13 = vsyncpa [#allocation6], 0
    %14 = vsyncpa [#allocation9], 0
    %15 = vsyncpa [#allocation4], 0
    %s16 = scalar_lea.sflag [#allocation4], 1
    %17 = vsyncpa %s16, 0
    loop: start=0, step=1, limit=4
    $region2: #{tpu_custom_call.1} parent=1 // loop_pre_header
      _
    $region3: #{tpu_custom_call.1} parent=1 // loop_header
      %s19 = sphi 0, %s23
      %p20 = scmp.ge.s32.totalorder %s19, 4
      %s29 = sphi 0, %s31
      %s32 = sphi 0, %s29
      %s33 = sphi 0, %s32
      %s49 = sphi 0, %s33
      %s53 = sphi 0, %s53
      %s55 = sphi 0, %s53
      %s56 = sphi 0, %s55
      %s70 = sphi 0, %s56
      %s74 = sphi 0, %s74
      %s76 = sphi 0, %s74
      %s77 = sphi 0, %s76
      %s91 = sphi 0, %s77
      %s95 = sphi 0, %s95
      %s97 = sphi 0, %s95
      %s98 = sphi 0, %s97
      %s112 = sphi 0, %s98
      %s116 = sphi 0, %s116
      %s118 = sphi 0, %s116
      %s119 = sphi 0, %s118
      %s133 = sphi 0, %s119
      %s139 = sphi 0, %s141
      %s142 = sphi 0, %s139
      %s143 = sphi 0, %s142
      %s159 = sphi 0, %s143
    $region4: #{tpu_custom_call.1} parent=1 // loop_header_branch
      %22 = sbr.rel (%p20) target = $region8
    $region5: #{tpu_custom_call.1} parent=1 // loop_body
      %s24 = ssub.s32 %s19, 1
      %s25 = ssub.s32 %s19, 2
      %s26 = sadd.s32 %s19, 1
      %s27 = ssub.s32 %s19, %s26
      %p28 = scmp.eq.s32.totalorder %s27, 0
      %s30 = sadd.s32 %s29, 1
      %s31 = scalar_select %p28, %s29, %s30
      %p34 = pneg %p28
      %p35 = scmp.eq.s32.totalorder %s19, 1
      %p36 = por %p34, %p35
      %p37 = scmp.ne.s32.totalorder %s29, %s32
      %p38 = scmp.eq.s32.totalorder %s19, 0
      %p39 = por %p37, %p38
      %p40 = scmp.ne.s32.totalorder %s29, %s32
      %p41 = scmp.eq.s32.totalorder %s24, 1
      %p42 = por %p40, %p41
      %p43 = scmp.ne.s32.totalorder %s32, %s33
      %p44 = scmp.eq.s32.totalorder %s24, 0
      %p45 = por %p43, %p44
      %p46 = scmp.ne.s32.totalorder %s32, %s33
      %p47 = scmp.eq.s32.totalorder %s25, 1
      %p48 = por %p46, %p47
      %p50 = scmp.ne.s32.totalorder %s33, %s49
      %p51 = scmp.eq.s32.totalorder %s25, 0
      %p52 = por %p50, %p51
      %s54 = sadd.s32 %s53, 1
      %p57 = scmp.eq.s32.totalorder %s19, 1
      %p58 = scmp.ne.s32.totalorder %s53, %s55
      %p59 = scmp.eq.s32.totalorder %s19, 0
      %p60 = por %p58, %p59
      %p61 = scmp.ne.s32.totalorder %s53, %s55
      %p62 = scmp.eq.s32.totalorder %s24, 1
      %p63 = por %p61, %p62
      %p64 = scmp.ne.s32.totalorder %s55, %s56
      %p65 = scmp.eq.s32.totalorder %s24, 0
      %p66 = por %p64, %p65
      %p67 = scmp.ne.s32.totalorder %s55, %s56
      %p68 = scmp.eq.s32.totalorder %s25, 1
      %p69 = por %p67, %p68
      %p71 = scmp.ne.s32.totalorder %s56, %s70
      %p72 = scmp.eq.s32.totalorder %s25, 0
      %p73 = por %p71, %p72
      %s75 = sadd.s32 %s74, 1
      %p78 = scmp.eq.s32.totalorder %s19, 1
      %p79 = scmp.ne.s32.totalorder %s74, %s76
      %p80 = scmp.eq.s32.totalorder %s19, 0
      %p81 = por %p79, %p80
      %p82 = scmp.ne.s32.totalorder %s74, %s76
      %p83 = scmp.eq.s32.totalorder %s24, 1
      %p84 = por %p82, %p83
      %p85 = scmp.ne.s32.totalorder %s76, %s77
      %p86 = scmp.eq.s32.totalorder %s24, 0
      %p87 = por %p85, %p86
      %p88 = scmp.ne.s32.totalorder %s76, %s77
      %p89 = scmp.eq.s32.totalorder %s25, 1
      %p90 = por %p88, %p89
      %p92 = scmp.ne.s32.totalorder %s77, %s91
      %p93 = scmp.eq.s32.totalorder %s25, 0
      %p94 = por %p92, %p93
      %s96 = sadd.s32 %s95, 1
      %p99 = scmp.eq.s32.totalorder %s19, 1
      %p100 = scmp.ne.s32.totalorder %s95, %s97
      %p101 = scmp.eq.s32.totalorder %s19, 0
      %p102 = por %p100, %p101
      %p103 = scmp.ne.s32.totalorder %s95, %s97
      %p104 = scmp.eq.s32.totalorder %s24, 1
      %p105 = por %p103, %p104
      %p106 = scmp.ne.s32.totalorder %s97, %s98
      %p107 = scmp.eq.s32.totalorder %s24, 0
      %p108 = por %p106, %p107
      %p109 = scmp.ne.s32.totalorder %s97, %s98
      %p110 = scmp.eq.s32.totalorder %s25, 1
      %p111 = por %p109, %p110
      %p113 = scmp.ne.s32.totalorder %s98, %s112
      %p114 = scmp.eq.s32.totalorder %s25, 0
      %p115 = por %p113, %p114
      %s117 = sadd.s32 %s116, 1
      %p120 = scmp.eq.s32.totalorder %s19, 1
      %p121 = scmp.ne.s32.totalorder %s116, %s118
      %p122 = scmp.eq.s32.totalorder %s19, 0
      %p123 = por %p121, %p122
      %p124 = scmp.ne.s32.totalorder %s116, %s118
      %p125 = scmp.eq.s32.totalorder %s24, 1
      %p126 = por %p124, %p125
      %p127 = scmp.ne.s32.totalorder %s118, %s119
      %p128 = scmp.eq.s32.totalorder %s24, 0
      %p129 = por %p127, %p128
      %p130 = scmp.ne.s32.totalorder %s118, %s119
      %p131 = scmp.eq.s32.totalorder %s25, 1
      %p132 = por %p130, %p131
      %p134 = scmp.ne.s32.totalorder %s119, %s133
      %p135 = scmp.eq.s32.totalorder %s25, 0
      %p136 = por %p134, %p135
      %s137 = ssub.s32 %s19, %s26
      %p138 = scmp.eq.s32.totalorder %s137, 0
      %s140 = sadd.s32 %s139, 1
      %s141 = scalar_select %p138, %s139, %s140
      %p144 = pneg %p138
      %p145 = scmp.eq.s32.totalorder %s19, 1
      %p146 = por %p144, %p145
      %p147 = scmp.ne.s32.totalorder %s139, %s142
      %p148 = scmp.eq.s32.totalorder %s19, 0
      %p149 = por %p147, %p148
      %p150 = scmp.ne.s32.totalorder %s139, %s142
      %p151 = scmp.eq.s32.totalorder %s24, 1
      %p152 = por %p150, %p151
      %p153 = scmp.ne.s32.totalorder %s142, %s143
      %p154 = scmp.eq.s32.totalorder %s24, 0
      %p155 = por %p153, %p154
      %p156 = scmp.ne.s32.totalorder %s142, %s143
      %p157 = scmp.eq.s32.totalorder %s25, 1
      %p158 = por %p156, %p157
      %p160 = scmp.ne.s32.totalorder %s143, %s159
      %p161 = scmp.eq.s32.totalorder %s25, 0
      %p162 = por %p160, %p161
      %p163 = scmp.le.s32.totalorder 1, %s19
      %p164 = scmp.lt.s32.totalorder %s19, 3
      %p165 = pnand %p163, %p164
      %p166 = pneg %p165
      // Predicated region
      $region9: #{tpu_custom_call.1} parent=5 // pred_check
        _
      $region10: #{tpu_custom_call.1} parent=5 // pred_check_branch
        %168 = sbr.rel (%p165) target = $region12
      $region11: #{tpu_custom_call.1} parent=5 // pred_region
        %s169 = ssub.s32 %s19, 1
        // Predicated region
        $region13: #{tpu_custom_call.1} parent=11 // pred_check
          %p170 = pneg %p66
        $region14: #{tpu_custom_call.1} parent=11 // pred_check_branch
          %172 = sbr.rel (%p170) target = $region16
        $region15: #{tpu_custom_call.1} parent=11 // pred_region
          %174 = vsyncadd [#allocation6], 0
          %s175 = sshll.u32 %s1, 4
          %s176 = int_to_ptr.hbm [resolvable:$true] %s175
          %s177 = sshll.u32 [#allocation5], 4
          %s178 = int_to_ptr.vmem [resolvable:$true] %s177
          %183 = dma.hbm_to_vmem [thread:$0]  %s176, 2048, %s178, [#allocation6], 128, 128, 8
        $region16: #{tpu_custom_call.1} parent=11 // pred_fallthru
          _
        // Predicated region
        $region17: #{tpu_custom_call.1} parent=11 // pred_check
          %p184 = pneg %p87
        $region18: #{tpu_custom_call.1} parent=11 // pred_check_branch
          %186 = sbr.rel (%p184) target = $region20
        $region19: #{tpu_custom_call.1} parent=11 // pred_region
          %188 = vsyncadd [#allocation6], 0
          %s190 = sshll.u32 %s2, 4
          %s191 = int_to_ptr.hbm [resolvable:$true] %s190
          %s192 = sshll.u32 [#allocation7], 4
          %s193 = int_to_ptr.vmem [resolvable:$true] %s192
          %195 = dma.hbm_to_vmem [thread:$0]  %s191, 32, %s193, [#allocation6]
        $region20: #{tpu_custom_call.1} parent=11 // pred_fallthru
          _
        // Predicated region
        $region21: #{tpu_custom_call.1} parent=11 // pred_check
          %p196 = pneg %p108
        $region22: #{tpu_custom_call.1} parent=11 // pred_check_branch
          %198 = sbr.rel (%p196) target = $region24
        $region23: #{tpu_custom_call.1} parent=11 // pred_region
          %200 = vsyncadd [#allocation9], 0
          %s201 = sshll.u32 %s3, 4
          %s202 = int_to_ptr.hbm [resolvable:$true] %s201
          %s203 = sshll.u32 [#allocation8], 4
          %s204 = int_to_ptr.vmem [resolvable:$true] %s203
          %209 = dma.hbm_to_vmem [thread:$0]  %s202, 2048, %s204, [#allocation9], 64, 64, 4
        $region24: #{tpu_custom_call.1} parent=11 // pred_fallthru
          _
        // Predicated region
        $region25: #{tpu_custom_call.1} parent=11 // pred_check
          %p210 = pneg %p129
        $region26: #{tpu_custom_call.1} parent=11 // pred_check_branch
          %212 = sbr.rel (%p210) target = $region28
        $region27: #{tpu_custom_call.1} parent=11 // pred_region
          _
        $region28: #{tpu_custom_call.1} parent=11 // pred_fallthru
          _
      $region12: #{tpu_custom_call.1} parent=5 // pred_fallthru
        _
      %p213 = scmp.lt.s32.totalorder %s19, 2
      // Predicated region
      $region29: #{tpu_custom_call.1} parent=5 // pred_check
        %p214 = pneg %p213
      $region30: #{tpu_custom_call.1} parent=5 // pred_check_branch
        %216 = sbr.rel (%p214) target = $region32
      $region31: #{tpu_custom_call.1} parent=5 // pred_region
        // Predicated region
        $region33: #{tpu_custom_call.1} parent=31 // pred_check
          %p217 = pneg %p39
        $region34: #{tpu_custom_call.1} parent=31 // pred_check_branch
          %219 = sbr.rel (%p217) target = $region36
        $region35: #{tpu_custom_call.1} parent=31 // pred_region
          %s220 = sand.u32 %s29, 1
          %s221 = scalar_lea.sflag [#allocation3], %s220
          %s222 = sand.u32 %s29, 1
          %s223 = smul.addr %s222, 8
          %s224 = scalar_lea.vmem [#allocation2], %s223
          %226 = vsyncadd %s221, 0
          %s227 = smul.addr %s19, 8
          %s228 = scalar_lea.hbm %s0, %s227
          %s230 = sshll.u32 %s228, 4
          %s231 = int_to_ptr.hbm [resolvable:$true] %s230
          %s232 = sshll.u32 %s224, 4
          %s233 = int_to_ptr.vmem [resolvable:$true] %s232
          %235 = dma.hbm_to_vmem [thread:$0]  %s231, 128, %s233, %s221
        $region36: #{tpu_custom_call.1} parent=31 // pred_fallthru
          _
      $region32: #{tpu_custom_call.1} parent=5 // pred_fallthru
        _
      %p236 = scmp.le.s32.totalorder 1, %s19
      %p237 = scmp.lt.s32.totalorder %s19, 3
      %p238 = pnand %p236, %p237
      %p239 = pneg %p238
      // Predicated region
      $region37: #{tpu_custom_call.1} parent=5 // pred_check
        _
      $region38: #{tpu_custom_call.1} parent=5 // pred_check_branch
        %241 = sbr.rel (%p238) target = $region40
      $region39: #{tpu_custom_call.1} parent=5 // pred_region
        %s242 = ssub.s32 %s19, 1
        %s243 = sand.u32 %s32, 1
        %s244 = scalar_lea.sflag [#allocation3], %s243
        %s245 = sand.u32 %s32, 1
        %s246 = smul.addr %s245, 8
        %s247 = scalar_lea.vmem [#allocation2], %s246
        // Predicated region
        $region41: #{tpu_custom_call.1} parent=39 // pred_check
          %p248 = pneg %p45
        $region42: #{tpu_custom_call.1} parent=39 // pred_check_branch
          %250 = sbr.rel (%p248) target = $region44
        $region43: #{tpu_custom_call.1} parent=39 // pred_region
          %252 = dma.done %s244, 128
        $region44: #{tpu_custom_call.1} parent=39 // pred_fallthru
          _
        // Predicated region
        $region45: #{tpu_custom_call.1} parent=39 // pred_check
          %p253 = pneg %p66
        $region46: #{tpu_custom_call.1} parent=39 // pred_check_branch
          %255 = sbr.rel (%p253) target = $region48
        $region47: #{tpu_custom_call.1} parent=39 // pred_region
          %257 = dma.done [#allocation6], 2048
        $region48: #{tpu_custom_call.1} parent=39 // pred_fallthru
          _
        // Predicated region
        $region49: #{tpu_custom_call.1} parent=39 // pred_check
          %p258 = pneg %p87
        $region50: #{tpu_custom_call.1} parent=39 // pred_check_branch
          %260 = sbr.rel (%p258) target = $region52
        $region51: #{tpu_custom_call.1} parent=39 // pred_region
          %262 = dma.done [#allocation6], 32
        $region52: #{tpu_custom_call.1} parent=39 // pred_fallthru
          _
        // Predicated region
        $region53: #{tpu_custom_call.1} parent=39 // pred_check
          %p263 = pneg %p108
        $region54: #{tpu_custom_call.1} parent=39 // pred_check_branch
          %265 = sbr.rel (%p263) target = $region56
        $region55: #{tpu_custom_call.1} parent=39 // pred_region
          %267 = dma.done [#allocation9], 2048
        $region56: #{tpu_custom_call.1} parent=39 // pred_fallthru
          _
        %s268 = sand.u32 %s32, 1
        %s269 = scalar_lea.sflag [#allocation3], %s268
        %s270 = sand.u32 %s32, 1
        %s271 = smul.addr %s270, 8
        %s272 = scalar_lea.vmem [#allocation2], %s271
        %p273 = pneg %p45
        %p274 = pneg %p42
        %p275 = pneg %p66
        %p276 = pneg %p63
        %p277 = pneg %p87
        %p278 = pneg %p84
        %p279 = pneg %p108
        %p280 = pneg %p105
        %p281 = pneg %p129
        %p282 = pneg %p126
        %p283 = pneg %p155
        %p284 = pneg %p152
        %s285 = sand.u32 %s142, 1
        %s286 = scalar_lea.sflag [#allocation4], %s285
        %s287 = sand.u32 %s142, 1
        %s288 = smul.addr %s287, 8
        %s289 = scalar_lea.vmem [#allocation10], %s288
        %v290 = vld [vmem:[%s247] sm:$0xff]
        %v291 = vpack.c.bf16 %v290, %v290
        %v292 = vld [vmem:[#allocation5] sm:$0xff]
        %v293 = vld [vmem:[#allocation5 + $0x8] sm:$0xff]
        %v294 = vld [vmem:[#allocation5 + $0x10] sm:$0xff]
        %v295 = vld [vmem:[#allocation5 + $0x18] sm:$0xff]
        %v296 = vld [vmem:[#allocation5 + $0x20] sm:$0xff]
        %v297 = vld [vmem:[#allocation5 + $0x28] sm:$0xff]
        %v298 = vld [vmem:[#allocation5 + $0x30] sm:$0xff]
        %v299 = vld [vmem:[#allocation5 + $0x38] sm:$0xff]
        %v300 = vld [vmem:[#allocation5 + $0x40] sm:$0xff]
        %v301 = vld [vmem:[#allocation5 + $0x48] sm:$0xff]
        %v302 = vld [vmem:[#allocation5 + $0x50] sm:$0xff]
        %v303 = vld [vmem:[#allocation5 + $0x58] sm:$0xff]
        %v304 = vld [vmem:[#allocation5 + $0x60] sm:$0xff]
        %v305 = vld [vmem:[#allocation5 + $0x68] sm:$0xff]
        %v306 = vld [vmem:[#allocation5 + $0x70] sm:$0xff]
        %v307 = vld [vmem:[#allocation5 + $0x78] sm:$0xff]
        %v308 = vld [vmem:[#allocation7] sm:$0x3]
        %v310 = vperm.slane %v308, 0
        %v311 = vperm.slane %v308, 1
        %v330 = vunpack.c.l.b16 %v292
        %v331 = vunpack.c.h.b16 %v292
        %v332 = vunpack.c.l.b16 %v293
        %v333 = vunpack.c.h.b16 %v293
        %v334 = vunpack.c.l.b16 %v294
        %v335 = vunpack.c.h.b16 %v294
        %v336 = vunpack.c.l.b16 %v295
        %v337 = vunpack.c.h.b16 %v295
        %v338 = vunpack.c.l.b16 %v296
        %v339 = vunpack.c.h.b16 %v296
        %v340 = vunpack.c.l.b16 %v297
        %v341 = vunpack.c.h.b16 %v297
        %v342 = vunpack.c.l.b16 %v298
        %v343 = vunpack.c.h.b16 %v298
        %v344 = vunpack.c.l.b16 %v299
        %v345 = vunpack.c.h.b16 %v299
        %v346 = vunpack.c.l.b16 %v300
        %v347 = vunpack.c.h.b16 %v300
        %v348 = vunpack.c.l.b16 %v301
        %v349 = vunpack.c.h.b16 %v301
        %v350 = vunpack.c.l.b16 %v302
        %v351 = vunpack.c.h.b16 %v302
        %v352 = vunpack.c.l.b16 %v303
        %v353 = vunpack.c.h.b16 %v303
        %v354 = vunpack.c.l.b16 %v304
        %v355 = vunpack.c.h.b16 %v304
        %v356 = vunpack.c.l.b16 %v305
        %v357 = vunpack.c.h.b16 %v305
        %v358 = vunpack.c.l.b16 %v306
        %v359 = vunpack.c.h.b16 %v306
        %v360 = vunpack.c.l.b16 %v307
        %v361 = vunpack.c.h.b16 %v307
        %v362 = vpack.c.b16 %v332, %v330
        %v363 = vpack.c.b16 %v333, %v331
        %v364 = vpack.c.b16 %v336, %v334
        %v365 = vpack.c.b16 %v337, %v335
        %v366 = vpack.c.b16 %v340, %v338
        %v367 = vpack.c.b16 %v341, %v339
        %v368 = vpack.c.b16 %v344, %v342
        %v369 = vpack.c.b16 %v345, %v343
        %v370 = vpack.c.b16 %v348, %v346
        %v371 = vpack.c.b16 %v349, %v347
        %v372 = vpack.c.b16 %v352, %v350
        %v373 = vpack.c.b16 %v353, %v351
        %v374 = vpack.c.b16 %v356, %v354
        %v375 = vpack.c.b16 %v357, %v355
        %v376 = vpack.c.b16 %v360, %v358
        %v377 = vpack.c.b16 %v361, %v359
        %394 = vmatpush.bf16.msra.mxu0 %v376
        %395 = vmatpush.bf16.msra.mxu0 %v374
        %396 = vmatpush.bf16.msra.mxu0 %v372
        %397 = vmatpush.bf16.msra.mxu0 %v370
        %398 = vmatpush.bf16.msra.mxu0 %v368
        %399 = vmatpush.bf16.msra.mxu0 %v366
        %400 = vmatpush.bf16.msra.mxu0 %v364
        %401 = vmatpush.bf16.msra.mxu0 %v362
        %402 = vmatmul.bf16.gmra.mxu0 %v291
        %v403 = vpop.f32.mrf.mxu0
        %v404 = vadd.f32 %v310, %v403
        %v405 = vpop.f32.mrf.mxu0
        %406 = vdwg.mxu0
        %407 = vmatpush.bf16.msra.mxu0 %v377
        %408 = vmatpush.bf16.msra.mxu0 %v375
        %409 = vmatpush.bf16.msra.mxu0 %v373
        %410 = vmatpush.bf16.msra.mxu0 %v371
        %411 = vmatpush.bf16.msra.mxu0 %v369
        %412 = vmatpush.bf16.msra.mxu0 %v367
        %413 = vmatpush.bf16.msra.mxu0 %v365
        %414 = vmatpush.bf16.msra.mxu0 %v363
        %415 = vmatmul.bf16.gmra.mxu0 %v291
        %v416 = vpop.f32.mrf.mxu0
        %v417 = vadd.f32 %v311, %v416
        %v418 = vpop.f32.mrf.mxu0
        %419 = vdwg.mxu0
        %v420 = vmul.f32 %v404, 0.5
        %v421 = vmul.f32 %v417, 0.5
        %v422 = vmul.f32 %v404, 0.70710677
        %v423 = vmul.f32 %v417, 0.70710677
        %v424 = vmul.f32 %v422, %v422
        %v425 = vmin.f32 16.0, %v424
        %v426 = vmul.f32 %v425, 2.1237322e-06
        %v427 = vadd.f32 %v426, 0.00028619796
        %v428 = vmul.f32 %v425, %v427
        %v429 = vadd.f32 %v428, 0.0036580483
        %v430 = vmul.f32 %v425, %v429
        %v431 = vadd.f32 %v430, 0.05243302
        %v432 = vmul.f32 %v425, %v431
        %v433 = vadd.f32 %v432, 0.18741608
        %v434 = vmul.f32 %v425, %v433
        %v435 = vadd.f32 %v434, 1.1283791
        %v436 = vmul.f32 %v422, %v435
        %v437 = vmul.f32 %v425, 3.8918573e-05
        %v438 = vadd.f32 %v437, 0.001143296
        %v439 = vmul.f32 %v425, %v438
        %v440 = vadd.f32 %v439, 0.014752088
        %v441 = vmul.f32 %v425, %v440
        %v442 = vadd.f32 %v441, 0.112945676
        %v443 = vmul.f32 %v425, %v442
        %v444 = vadd.f32 %v443, 0.4994258
        %v445 = vmul.f32 %v425, %v444
        %v446 = vadd.f32 %v445, 1.0
        %v447 = vrcp.pop %v446
        %v448 = vmul.f32 %v446, %v447
        %v449 = vsub.f32 1.0, %v448
        %v450 = vmul.f32 %v447, %v449
        %v451 = vadd.f32 %v447, %v450
        %vm452 = vweird.f32 %v446
        %vm453 = vweird.f32 %v447
        %vm454 = vmor %vm452, %vm453
        %v455 = vsel %vm454, %v447, %v451
        %v456 = vand.u32 2147483647, %v446
        %vm457 = vcmp.eq.f32.partialorder %v456, 8.507059e+37
        %v458 = vand.u32 %v446, 2147483648
        %v459 = vor.u32 1.1754944e-38, %v458
        %v460 = vsel %vm457, %v459, %v455
        %v461 = vmul.f32 %v436, %v460
        %v462 = vmin.f32 %v461, 1.0
        %v463 = vmax.f32 %v462, -1.0
        %v464 = vmul.f32 %v423, %v423
        %v465 = vmin.f32 16.0, %v464
        %v466 = vmul.f32 %v465, 2.1237322e-06
        %v467 = vadd.f32 %v466, 0.00028619796
        %v468 = vmul.f32 %v465, %v467
        %v469 = vadd.f32 %v468, 0.0036580483
        %v470 = vmul.f32 %v465, %v469
        %v471 = vadd.f32 %v470, 0.05243302
        %v472 = vmul.f32 %v465, %v471
        %v473 = vadd.f32 %v472, 0.18741608
        %v474 = vmul.f32 %v465, %v473
        %v475 = vadd.f32 %v474, 1.1283791
        %v476 = vmul.f32 %v423, %v475
        %v477 = vmul.f32 %v465, 3.8918573e-05
        %v478 = vadd.f32 %v477, 0.001143296
        %v479 = vmul.f32 %v465, %v478
        %v480 = vadd.f32 %v479, 0.014752088
        %v481 = vmul.f32 %v465, %v480
        %v482 = vadd.f32 %v481, 0.112945676
        %v483 = vmul.f32 %v465, %v482
        %v484 = vadd.f32 %v483, 0.4994258
        %v485 = vmul.f32 %v465, %v484
        %v486 = vadd.f32 %v485, 1.0
        %v487 = vrcp.pop %v486
        %v488 = vmul.f32 %v486, %v487
        %v489 = vsub.f32 1.0, %v488
        %v490 = vmul.f32 %v487, %v489
        %v491 = vadd.f32 %v487, %v490
        %vm492 = vweird.f32 %v486
        %vm493 = vweird.f32 %v487
        %vm494 = vmor %vm492, %vm493
        %v495 = vsel %vm494, %v487, %v491
        %v496 = vand.u32 2147483647, %v486
        %vm497 = vcmp.eq.f32.partialorder %v496, 8.507059e+37
        %v498 = vand.u32 %v486, 2147483648
        %v499 = vor.u32 1.1754944e-38, %v498
        %v500 = vsel %vm497, %v499, %v495
        %v501 = vmul.f32 %v476, %v500
        %v502 = vmin.f32 %v501, 1.0
        %v503 = vmax.f32 %v502, -1.0
        %v504 = vadd.f32 %v463, 1.0
        %v505 = vadd.f32 %v503, 1.0
        %v506 = vmul.f32 %v420, %v504
        %v507 = vmul.f32 %v421, %v505
        %v508 = vpack.c.bf16 %v506, %v506
        %v509 = vpack.c.bf16 %v507, %v507
        %v510 = vld [vmem:[#allocation8] sm:$0xf]
        %v511 = vld [vmem:[#allocation8 + $0x4] sm:$0xf]
        %v512 = vld [vmem:[#allocation8 + $0x8] sm:$0xf]
        %v513 = vld [vmem:[#allocation8 + $0xc] sm:$0xf]
        %v514 = vld [vmem:[#allocation8 + $0x10] sm:$0xf]
        %v515 = vld [vmem:[#allocation8 + $0x14] sm:$0xf]
        %v516 = vld [vmem:[#allocation8 + $0x18] sm:$0xf]
        %v517 = vld [vmem:[#allocation8 + $0x1c] sm:$0xf]
        %v518 = vld [vmem:[#allocation8 + $0x20] sm:$0xf]
        %v519 = vld [vmem:[#allocation8 + $0x24] sm:$0xf]
        %v520 = vld [vmem:[#allocation8 + $0x28] sm:$0xf]
        %v521 = vld [vmem:[#allocation8 + $0x2c] sm:$0xf]
        %v522 = vld [vmem:[#allocation8 + $0x30] sm:$0xf]
        %v523 = vld [vmem:[#allocation8 + $0x34] sm:$0xf]
        %v524 = vld [vmem:[#allocation8 + $0x38] sm:$0xf]
        %v525 = vld [vmem:[#allocation8 + $0x3c] sm:$0xf]
        %v526 = vld [vmem:[#allocation8 + $0x40] sm:$0xf]
        %v527 = vld [vmem:[#allocation8 + $0x44] sm:$0xf]
        %v528 = vld [vmem:[#allocation8 + $0x48] sm:$0xf]
        %v529 = vld [vmem:[#allocation8 + $0x4c] sm:$0xf]
        %v530 = vld [vmem:[#allocation8 + $0x50] sm:$0xf]
        %v531 = vld [vmem:[#allocation8 + $0x54] sm:$0xf]
        %v532 = vld [vmem:[#allocation8 + $0x58] sm:$0xf]
        %v533 = vld [vmem:[#allocation8 + $0x5c] sm:$0xf]
        %v534 = vld [vmem:[#allocation8 + $0x60] sm:$0xf]
        %v535 = vld [vmem:[#allocation8 + $0x64] sm:$0xf]
        %v536 = vld [vmem:[#allocation8 + $0x68] sm:$0xf]
        %v537 = vld [vmem:[#allocation8 + $0x6c] sm:$0xf]
        %v538 = vld [vmem:[#allocation8 + $0x70] sm:$0xf]
        %v539 = vld [vmem:[#allocation8 + $0x74] sm:$0xf]
        %v540 = vld [vmem:[#allocation8 + $0x78] sm:$0xf]
        %v541 = vld [vmem:[#allocation8 + $0x7c] sm:$0xf]
        %v542 = vld [vmem:[%s4] sm:$0x1]
        %v544 = vperm.slane %v542, 0
        %v578 = vunpack.c.l.b16 %v510
        %v579 = vunpack.c.l.b16 %v511
        %v580 = vunpack.c.l.b16 %v512
        %v581 = vunpack.c.l.b16 %v513
        %v582 = vunpack.c.l.b16 %v514
        %v583 = vunpack.c.l.b16 %v515
        %v584 = vunpack.c.l.b16 %v516
        %v585 = vunpack.c.l.b16 %v517
        %v586 = vunpack.c.l.b16 %v518
        %v587 = vunpack.c.l.b16 %v519
        %v588 = vunpack.c.l.b16 %v520
        %v589 = vunpack.c.l.b16 %v521
        %v590 = vunpack.c.l.b16 %v522
        %v591 = vunpack.c.l.b16 %v523
        %v592 = vunpack.c.l.b16 %v524
        %v593 = vunpack.c.l.b16 %v525
        %v594 = vunpack.c.l.b16 %v526
        %v595 = vunpack.c.l.b16 %v527
        %v596 = vunpack.c.l.b16 %v528
        %v597 = vunpack.c.l.b16 %v529
        %v598 = vunpack.c.l.b16 %v530
        %v599 = vunpack.c.l.b16 %v531
        %v600 = vunpack.c.l.b16 %v532
        %v601 = vunpack.c.l.b16 %v533
        %v602 = vunpack.c.l.b16 %v534
        %v603 = vunpack.c.l.b16 %v535
        %v604 = vunpack.c.l.b16 %v536
        %v605 = vunpack.c.l.b16 %v537
        %v606 = vunpack.c.l.b16 %v538
        %v607 = vunpack.c.l.b16 %v539
        %v608 = vunpack.c.l.b16 %v540
        %v609 = vunpack.c.l.b16 %v541
        %v610 = vpack.c.b16 %v579, %v578
        %v611 = vpack.c.b16 %v581, %v580
        %v612 = vpack.c.b16 %v583, %v582
        %v613 = vpack.c.b16 %v585, %v584
        %v614 = vpack.c.b16 %v587, %v586
        %v615 = vpack.c.b16 %v589, %v588
        %v616 = vpack.c.b16 %v591, %v590
        %v617 = vpack.c.b16 %v593, %v592
        %v618 = vpack.c.b16 %v595, %v594
        %v619 = vpack.c.b16 %v597, %v596
        %v620 = vpack.c.b16 %v599, %v598
        %v621 = vpack.c.b16 %v601, %v600
        %v622 = vpack.c.b16 %v603, %v602
        %v623 = vpack.c.b16 %v605, %v604
        %v624 = vpack.c.b16 %v607, %v606
        %v625 = vpack.c.b16 %v609, %v608
        %642 = vmatpush.bf16.msra.mxu0 %v617
        %643 = vmatpush.bf16.msra.mxu0 %v616
        %644 = vmatpush.bf16.msra.mxu0 %v615
        %645 = vmatpush.bf16.msra.mxu0 %v614
        %646 = vmatpush.bf16.msra.mxu0 %v613
        %647 = vmatpush.bf16.msra.mxu0 %v612
        %648 = vmatpush.bf16.msra.mxu0 %v611
        %649 = vmatpush.bf16.msra.mxu0 %v610
        %650 = vmatmul.bf16.gmra.mxu0 %v508
        %v651 = vpop.f32.mrf.mxu0
        %v652 = vadd.f32 %v544, %v651
        %v653 = vpop.f32.mrf.mxu0
        %654 = vdwg.mxu0
        %655 = vmatpush.bf16.msra.mxu0 %v625
        %656 = vmatpush.bf16.msra.mxu0 %v624
        %657 = vmatpush.bf16.msra.mxu0 %v623
        %658 = vmatpush.bf16.msra.mxu0 %v622
        %659 = vmatpush.bf16.msra.mxu0 %v621
        %660 = vmatpush.bf16.msra.mxu0 %v620
        %661 = vmatpush.bf16.msra.mxu0 %v619
        %662 = vmatpush.bf16.msra.mxu0 %v618
        %663 = vmatmul.bf16.gmra.mxu0 %v509
        %v664 = vpop.f32.mrf.mxu0
        %v665 = vadd.f32 %v652, %v664
        %v666 = vpop.f32.mrf.mxu0
        %667 = vdwg.mxu0
        %668 = vst [vmem:[%s289] sm:$0xff] %v665
        %s669 = sand.u32 %s142, 1
        %s670 = scalar_lea.sflag [#allocation4], %s669
        %s671 = sand.u32 %s142, 1
        %s672 = smul.addr %s671, 8
        %s673 = scalar_lea.vmem [#allocation10], %s672
        // Predicated region
        $region57: #{tpu_custom_call.1} parent=39 // pred_check
          %p674 = pneg %p152
        $region58: #{tpu_custom_call.1} parent=39 // pred_check_branch
          %676 = sbr.rel (%p674) target = $region60
        $region59: #{tpu_custom_call.1} parent=39 // pred_region
          %678 = vsyncadd %s670, 0
          %s679 = smul.addr %s24, 8
          %s680 = scalar_lea.hbm %s5, %s679
          %s682 = sshll.u32 %s673, 4
          %s683 = int_to_ptr.vmem [resolvable:$true] %s682
          %s684 = sshll.u32 %s680, 4
          %s685 = int_to_ptr.hbm [resolvable:$true] %s684
          %687 = dma.vmem_to_hbm [thread:$0]  %s683, 128, %s685, %s670
        $region60: #{tpu_custom_call.1} parent=39 // pred_fallthru
          _
      $region40: #{tpu_custom_call.1} parent=5 // pred_fallthru
        _
      %p688 = scmp.le.s32.totalorder 2, %s19
      // Predicated region
      $region61: #{tpu_custom_call.1} parent=5 // pred_check
        %p689 = pneg %p688
      $region62: #{tpu_custom_call.1} parent=5 // pred_check_branch
        %691 = sbr.rel (%p689) target = $region64
      $region63: #{tpu_custom_call.1} parent=5 // pred_region
        %s692 = ssub.s32 %s19, 2
        // Predicated region
        $region65: #{tpu_custom_call.1} parent=63 // pred_check
          %p693 = pneg %p158
        $region66: #{tpu_custom_call.1} parent=63 // pred_check_branch
          %695 = sbr.rel (%p693) target = $region68
        $region67: #{tpu_custom_call.1} parent=63 // pred_region
          %s696 = sand.u32 %s143, 1
          %s697 = scalar_lea.sflag [#allocation4], %s696
          %s698 = sand.u32 %s143, 1
          %s699 = smul.addr %s698, 8
          %s700 = scalar_lea.vmem [#allocation10], %s699
          %702 = dma.done %s697, 128
        $region68: #{tpu_custom_call.1} parent=63 // pred_fallthru
          _
      $region64: #{tpu_custom_call.1} parent=5 // pred_fallthru
        _
    $region6: #{tpu_custom_call.1} parent=1 // loop_footer
      %s23 = sadd.s32 1, %s19
    $region7: #{tpu_custom_call.1} parent=1 // loop_footer_branch
      %18 = sbr.rel target = $region3
    $region8: #{tpu_custom_call.1} parent=1 // loop_exit
      _
    %703 = vsyncpa [#allocation3], 1
    %s704 = scalar_lea.sflag [#allocation3], 1
    %705 = vsyncpa %s704, 1
    %706 = vsyncpa [#allocation6], 1
    %707 = vsyncpa [#allocation9], 1
    %708 = vsyncpa [#allocation4], 1
    %s709 = scalar_lea.sflag [#allocation4], 1
    %710 = vsyncpa %s709, 1

</llo_original>
